<compile_context>
chip_gen: v6e
topology: v6e:2x2x1
jax: 0.10.0
libtpu: 0.0.40
codegen_flags: <defaults>
</compile_context>

<pallas_src>
import functools

import jax
import jax.numpy as jnp
from jax import lax
from jax.experimental import pallas as pl
from jax.experimental.pallas import tpu as pltpu
from jax.scipy.special import logsumexp as _xla_logsumexp

_LANES = 128
# Finite "minus infinity" sentinel for the running max: behaves like -inf for
# any realistic logit while avoiding exp(-inf - (-inf)) = NaN in the update.
_M_INIT = -1e30


def _cdiv(a: int, b: int) -> int:
    return -(-a // b)


def _choose_block_rows(max_n: int, itemsize: int) -> int:
    """Largest useful block (~1 MiB of input), sublane-aligned (multiple of 16)."""
    rows_needed = _cdiv(max(max_n, 1), _LANES)
    rows = ((rows_needed + 15) // 16) * 16                  # bf16-safe sublanes
    cap = ((1 << 20) // (_LANES * itemsize) // 16) * 16     # ~1 MiB per block
    return max(16, min(cap, rows))


def _supcon_loss_kernel(sp_ref, sn_ref, lse_p_ref, lse_n_ref,
                        m_p_ref, l_p_ref, m_n_ref, l_n_ref,
                        *, block_rows, blocks_per_split, g_p, g_n,
                        n_p, n_n, scale_p, scale_n):
    c = pl.program_id(0)                  # split index ("parallel" across cores)
    j = pl.program_id(1)                  # block within the split ("arbitrary")
    b = c * blocks_per_split + j          # global block index

    # ---- (re)initialize the per-split running state --------------------------
    @pl.when(j == 0)
    def _init():
        neg = jnp.full((block_rows, _LANES), _M_INIT, dtype=jnp.float32)
        zero = jnp.zeros((block_rows, _LANES), dtype=jnp.float32)
        m_p_ref[...] = neg
        m_n_ref[...] = neg
        l_p_ref[...] = zero
        l_n_ref[...] = zero

    # Element index of every lane of this block within the padded 1-D stream.
    row_ids = lax.broadcasted_iota(jnp.int32, (block_rows, _LANES), 0)
    lane_ids = lax.broadcasted_iota(jnp.int32, (block_rows, _LANES), 1)
    elem_idx = b * (block_rows * _LANES) + row_ids * _LANES + lane_ids

    def _online_update(logits, m_ref, l_ref):
        # Per-lane streaming logsumexp; single exp per element:
        #   e = exp(min(m, x) - max(m, x)) is the rescale factor when x > m and
        #   the new contribution when x <= m.  All VPU + 1 EUP op; no XLU.
        m_old = m_ref[...]
        l_old = l_ref[...]
        m_new = jnp.maximum(m_old, logits)
        e = jnp.exp(jnp.minimum(m_old, logits) - m_new)
        take_new = logits > m_old
        l_ref[...] = jnp.where(take_new, e * l_old + 1.0, l_old + e)
        m_ref[...] = m_new

    # ---- negative stream (skipped entirely once past its last block) ---------
    @pl.when(b < g_n)
    def _neg():
        sn = sn_ref[...].astype(jnp.float32)
        an = jnp.maximum(sn + 0.2, 0.0)             # clamp_min(sn + 0.2, 0)
        logit_n = an * (0.2 - sn) * scale_n         # == -an * (sn - 0.2) * 256/Nn
        logit_n = jnp.where(elem_idx < n_n, logit_n, -jnp.inf)
        _online_update(logit_n, m_n_ref, l_n_ref)

    # ---- positive stream ------------------------------------------------------
    @pl.when(b < g_p)
    def _pos():
        sp = sp_ref[...].astype(jnp.float32)
        ap = jnp.maximum(1.2 - sp, 0.0)             # clamp_min(-sp + 1.2, 0)
        logit_p = ap * (sp - 0.8) * scale_p         # == ap * (sp - 0.8) * 256/Np
        logit_p = jnp.where(elem_idx < n_p, logit_p, -jnp.inf)
        _online_update(logit_p, m_p_ref, l_p_ref)

    # ---- finalize: per-split partial LSE (XLU reduces + log only happen here) -
    @pl.when(j == pl.num_programs(1) - 1)
    def _finalize():
        def _lse(m_ref, l_ref):
            m = m_ref[...]
            l = l_ref[...]
            mx = jnp.max(jnp.max(m, axis=1, keepdims=True), axis=0, keepdims=True)
            tot = jnp.sum(jnp.sum(l * jnp.exp(m - mx), axis=1, keepdims=True),
                          axis=0, keepdims=True)
            return mx + jnp.log(tot)                # (1, 1); -inf if split empty
        lse_p_ref[...] = _lse(m_p_ref, l_p_ref)
        lse_n_ref[...] = _lse(m_n_ref, l_n_ref)


class SupConLossPallas:
    """Pallas TPU implementation of SupConLoss.forward.

    NOTE: like the PyTorch reference, forward() hard-codes margin 0.2 and scale
    256; the constructor's m/s are stored only for interface parity.
    """

    def __init__(self, m: float, s: float) -> None:
        self.m = m
        self.s = s

    def __call__(self, sp: jax.Array, sn: jax.Array, *,
                 block_rows: int | None = None, num_splits: int = 2) -> jax.Array:
        sp = sp.reshape(-1)          # reference uses 1-D similarity vectors
        sn = sn.reshape(-1)
        n_p = int(sp.shape[0])
        n_n = int(sn.shape[0])
        if n_p == 0 or n_n == 0:
            raise ValueError("sp and sn must be non-empty")

        max_itemsize = max(sp.dtype.itemsize, sn.dtype.itemsize)
        if block_rows is None:
            block_rows = _choose_block_rows(max(n_p, n_n), max_itemsize)
        block_elems = block_rows * _LANES

        # Per-stream block counts; each stream is padded only to its OWN size.
        g_p = _cdiv(n_p, block_elems)
        g_n = _cdiv(n_n, block_elems)
        g_max = max(g_p, g_n)
        num_splits = max(1, min(int(num_splits), g_max))
        blocks_per_split = _cdiv(g_max, num_splits)

        def _prep(x, n, g):
            pad = g * block_elems - n
            if pad:                                   # only the final partial block
                x = jnp.pad(x, (0, pad))
            return x.reshape(g * block_rows, _LANES)  # free for contiguous 1-D

        sp2 = _prep(sp, n_p, g_p)
        sn2 = _prep(sn, n_n, g_n)

        def _in_map(g_s):
            last = g_s - 1
            # Clamp past-the-end grid steps onto the resident last block: the
            # block index does not change, so no new DMA is issued for them.
            return lambda c, j: (jnp.minimum(c * blocks_per_split + j, last), 0)

        kernel = functools.partial(
            _supcon_loss_kernel,
            block_rows=block_rows, blocks_per_split=blocks_per_split,
            g_p=g_p, g_n=g_n, n_p=n_p, n_n=n_n,
            scale_p=256.0 / n_p, scale_n=256.0 / n_n,
        )

        # Double-buffered inputs + f32 state; raise the scoped-VMEM limit only
        # when the working set would exceed the conservative defaults.
        in_bytes = 2 * block_rows * _LANES * (sp2.dtype.itemsize + sn2.dtype.itemsize)
        state_bytes = 4 * block_rows * _LANES * 4
        vmem_need = in_bytes + state_bytes + (2 << 20)
        vmem_limit = None if vmem_need <= (12 << 20) else int(vmem_need * 1.25)

        lse_p, lse_n = pl.pallas_call(
            kernel,
            out_shape=(jax.ShapeDtypeStruct((num_splits, 1), jnp.float32),
                       jax.ShapeDtypeStruct((num_splits, 1), jnp.float32)),
            grid_spec=pltpu.PrefetchScalarGridSpec(
                num_scalar_prefetch=0,
                grid=(num_splits, blocks_per_split),
                in_specs=[
                    pl.BlockSpec((block_rows, _LANES), _in_map(g_p)),
                    pl.BlockSpec((block_rows, _LANES), _in_map(g_n)),
                ],
                out_specs=[
                    pl.BlockSpec((1, 1), lambda c, j: (c, 0)),
                    pl.BlockSpec((1, 1), lambda c, j: (c, 0)),
                ],
                scratch_shapes=[pltpu.VMEM((block_rows, _LANES), jnp.float32)
                                for _ in range(4)],   # m_p, l_p, m_n, l_n
            ),
            compiler_params=pltpu.CompilerParams(
                dimension_semantics=("parallel", "arbitrary"),
                vmem_limit_bytes=vmem_limit,
            ),
        )(sp2, sn2)

        # Tiny scalar epilogue in plain XLA: combine per-split partial LSEs.
        z = _xla_logsumexp(lse_p) + _xla_logsumexp(lse_n)
        return 0.02 * jax.nn.softplus(z)


def _reference_jnp(sp, sn):
    sp = sp.reshape(-1).astype(jnp.float32)
    sn = sn.reshape(-1).astype(jnp.float32)
    an = jnp.maximum(sn + 0.2, 0.0)
    ap = jnp.maximum(-sp + 1.2, 0.0)
    logit_n = -an * (sn - 0.2) * 256.0 / sn.shape[0]
    logit_p = ap * (sp - 0.8) * 256.0 / sp.shape[0]
    z = _xla_logsumexp(logit_n) + _xla_logsumexp(logit_p)
    return 0.02 * jax.nn.softplus(z)


if __name__ == "__main__":
    key = jax.random.PRNGKey(0)
    k1, k2, k3, k4, k5, k6 = jax.random.split(key, 6)

    loss_fn = SupConLossPallas(m=0.2, s=256.0)

    # Case 1: tiny 1-D similarity vectors (the realistic shapes for this module).
    sp_a = jax.random.uniform(k1, (8,), jnp.float32, -1.0, 1.0)
    sn_a = jax.random.uniform(k2, (16,), jnp.float32, -1.0, 1.0)
    out1 = jax.block_until_ready(loss_fn(sp_a, sn_a))
    ref1 = _reference_jnp(sp_a, sn_a)
    assert jnp.allclose(out1, ref1, rtol=1e-4, atol=1e-5), (out1, ref1)

    # Case 2: unequal, non-block-aligned lengths with a forced small block so
    # the grid has several steps per split: exercises streaming LSE, per-stream
    # padding, clamped index_maps, block-skip gating and the 2-way core split.
    sp_b = jax.random.uniform(k3, (5000,), jnp.float32, -1.0, 1.0)
    sn_b = jax.random.uniform(k4, (2500,), jnp.float32, -1.0, 1.0)
    out2 = jax.block_until_ready(loss_fn(sp_b, sn_b, block_rows=16, num_splits=2))
    ref2 = _reference_jnp(sp_b, sn_b)
    assert jnp.allclose(out2, ref2, rtol=1e-4, atol=1e-5), (out2, ref2)

    # Same inputs with the split disabled: must agree with the split version.
    out2b = jax.block_until_ready(loss_fn(sp_b, sn_b, block_rows=16, num_splits=1))
    assert jnp.allclose(out2b, ref2, rtol=1e-4, atol=1e-5), (out2b, ref2)

    # Case 3: native bf16 inputs (kernel upcasts; no wrapper-side f32 copy).
    sp_c = jax.random.uniform(k5, (384,), jnp.float32, -1.0, 1.0).astype(jnp.bfloat16)
    sn_c = jax.random.uniform(k6, (200,), jnp.float32, -1.0, 1.0).astype(jnp.bfloat16)
    out3 = jax.block_until_ready(loss_fn(sp_c, sn_c))
    ref3 = _reference_jnp(sp_c, sn_c)
    assert jnp.allclose(out3, ref3, rtol=1e-4, atol=1e-4), (out3, ref3)

    print("KERNEL_OK")
</pallas_src>

<mosaic_0001>
module attributes {stable_mosaic.version = 11 : i64} {
  func.func @_supcon_loss_kernel(%arg0: i32, %arg1: i32, %arg2: memref<16x128xf32, #tpu.memory_space<vmem>>, %arg3: memref<16x128xf32, #tpu.memory_space<vmem>>, %arg4: memref<1x1xf32, #tpu.memory_space<vmem>>, %arg5: memref<1x1xf32, #tpu.memory_space<vmem>>, %arg6: memref<16x128xf32, #tpu.memory_space<vmem>>, %arg7: memref<16x128xf32, #tpu.memory_space<vmem>>, %arg8: memref<16x128xf32, #tpu.memory_space<vmem>>, %arg9: memref<16x128xf32, #tpu.memory_space<vmem>>) attributes {dimension_semantics = [#tpu.dimension_semantics<parallel>, #tpu.dimension_semantics<arbitrary>], iteration_bounds = array<i64: 1, 1>, scalar_prefetch = 0 : i64, scratch_operands = 4 : i64, tpu.core_type = #tpu.core_type<tc>, window_params = [{transform_indices = @transform_0, window_bounds = array<i64: 16, 128>}, {transform_indices = @transform_1, window_bounds = array<i64: 16, 128>}, {transform_indices = @transform_2, window_bounds = array<i64: 1, 1>}, {transform_indices = @transform_3, window_bounds = array<i64: 1, 1>}]} {
    %c1_i32 = arith.constant 1 : i32
    %0 = arith.muli %arg0, %c1_i32 : i32
    %1 = arith.addi %0, %arg1 : i32
    %c0_i32 = arith.constant 0 : i32
    %2 = arith.cmpi eq, %arg1, %c0_i32 : i32
    %3 = arith.extui %2 : i1 to i32
    %c0_i32_0 = arith.constant 0 : i32
    %4 = arith.cmpi ne, %3, %c0_i32_0 : i32
    scf.if %4 {
      %cst = arith.constant -1.000000e+30 : f32
      %22 = vector.broadcast %cst : f32 to vector<16x128xf32>
      %cst_7 = arith.constant 0.000000e+00 : f32
      %23 = vector.broadcast %cst_7 : f32 to vector<16x128xf32>
      %c0 = arith.constant 0 : index
      %c0_8 = arith.constant 0 : index
      %24 = vector.load %arg6[%c0, %c0_8] : memref<16x128xf32, #tpu.memory_space<vmem>>, vector<16x128xf32>
      tpu.vector_store %arg6[%c0, %c0_8], %22 {strides = array<i32>} : memref<16x128xf32, #tpu.memory_space<vmem>>, vector<16x128xf32>,
      %c0_9 = arith.constant 0 : index
      %c0_10 = arith.constant 0 : index
      %25 = vector.load %arg8[%c0_9, %c0_10] : memref<16x128xf32, #tpu.memory_space<vmem>>, vector<16x128xf32>
      tpu.vector_store %arg8[%c0_9, %c0_10], %22 {strides = array<i32>} : memref<16x128xf32, #tpu.memory_space<vmem>>, vector<16x128xf32>,
      %c0_11 = arith.constant 0 : index
      %c0_12 = arith.constant 0 : index
      %26 = vector.load %arg7[%c0_11, %c0_12] : memref<16x128xf32, #tpu.memory_space<vmem>>, vector<16x128xf32>
      tpu.vector_store %arg7[%c0_11, %c0_12], %23 {strides = array<i32>} : memref<16x128xf32, #tpu.memory_space<vmem>>, vector<16x128xf32>,
      %c0_13 = arith.constant 0 : index
      %c0_14 = arith.constant 0 : index
      %27 = vector.load %arg9[%c0_13, %c0_14] : memref<16x128xf32, #tpu.memory_space<vmem>>, vector<16x128xf32>
      tpu.vector_store %arg9[%c0_13, %c0_14], %23 {strides = array<i32>} : memref<16x128xf32, #tpu.memory_space<vmem>>, vector<16x128xf32>,
    } else {
    }
    %5 = tpu.iota {dimensions = array<i32: 0>} : vector<16x128xi32>
    %6 = tpu.iota {dimensions = array<i32: 1>} : vector<16x128xi32>
    %c2048_i32 = arith.constant 2048 : i32
    %7 = arith.muli %1, %c2048_i32 : i32
    %c128_i32 = arith.constant 128 : i32
    %8 = vector.broadcast %c128_i32 : i32 to vector<16x128xi32>
    %9 = arith.muli %5, %8 : vector<16x128xi32>
    %10 = vector.broadcast %7 : i32 to vector<16x128xi32>
    %11 = arith.addi %10, %9 : vector<16x128xi32>
    %12 = arith.addi %11, %6 : vector<16x128xi32>
    %c1_i32_1 = arith.constant 1 : i32
    %13 = arith.cmpi slt, %1, %c1_i32_1 : i32
    %14 = arith.extui %13 : i1 to i32
    %c0_i32_2 = arith.constant 0 : i32
    %15 = arith.cmpi ne, %14, %c0_i32_2 : i32
    scf.if %15 {
      %c0 = arith.constant 0 : index
      %c0_7 = arith.constant 0 : index
      %22 = vector.load %arg3[%c0, %c0_7] : memref<16x128xf32, #tpu.memory_space<vmem>>, vector<16x128xf32>
      %cst = arith.constant 2.000000e-01 : f32
      %23 = vector.broadcast %cst : f32 to vector<16x128xf32>
      %24 = arith.addf %22, %23 : vector<16x128xf32>
      %cst_8 = arith.constant 0.000000e+00 : f32
      %25 = vector.broadcast %cst_8 : f32 to vector<16x128xf32>
      %26 = arith.maximumf %24, %25 : vector<16x128xf32>
      %cst_9 = arith.constant 2.000000e-01 : f32
      %27 = vector.broadcast %cst_9 : f32 to vector<16x128xf32>
      %28 = arith.subf %27, %22 : vector<16x128xf32>
      %29 = arith.mulf %26, %28 : vector<16x128xf32>
      %cst_10 = arith.constant 1.600000e+01 : f32
      %30 = vector.broadcast %cst_10 : f32 to vector<16x128xf32>
      %31 = arith.mulf %29, %30 : vector<16x128xf32>
      %c16_i32 = arith.constant 16 : i32
      %32 = vector.broadcast %c16_i32 : i32 to vector<16x128xi32>
      %33 = arith.cmpi slt, %12, %32 : vector<16x128xi32>
      %cst_11 = arith.constant 0xFF800000 : f32
      %34 = vector.broadcast %cst_11 : f32 to vector<16x128xf32>
      %35 = arith.select %33, %31, %34 : vector<16x128xi1>, vector<16x128xf32>
      %c0_12 = arith.constant 0 : index
      %c0_13 = arith.constant 0 : index
      %36 = vector.load %arg8[%c0_12, %c0_13] : memref<16x128xf32, #tpu.memory_space<vmem>>, vector<16x128xf32>
      %c0_14 = arith.constant 0 : index
      %c0_15 = arith.constant 0 : index
      %37 = vector.load %arg9[%c0_14, %c0_15] : memref<16x128xf32, #tpu.memory_space<vmem>>, vector<16x128xf32>
      %38 = arith.maximumf %36, %35 : vector<16x128xf32>
      %39 = arith.minimumf %36, %35 : vector<16x128xf32>
      %40 = arith.subf %39, %38 : vector<16x128xf32>
      %41 = math.exp %40 : vector<16x128xf32>
      %42 = arith.cmpf ogt, %35, %36 : vector<16x128xf32>
      %43 = arith.mulf %41, %37 : vector<16x128xf32>
      %cst_16 = arith.constant 1.000000e+00 : f32
      %44 = vector.broadcast %cst_16 : f32 to vector<16x128xf32>
      %45 = arith.addf %43, %44 : vector<16x128xf32>
      %46 = arith.addf %37, %41 : vector<16x128xf32>
      %47 = arith.select %42, %45, %46 : vector<16x128xi1>, vector<16x128xf32>
      %c0_17 = arith.constant 0 : index
      %c0_18 = arith.constant 0 : index
      %48 = vector.load %arg9[%c0_17, %c0_18] : memref<16x128xf32, #tpu.memory_space<vmem>>, vector<16x128xf32>
      tpu.vector_store %arg9[%c0_17, %c0_18], %47 {strides = array<i32>} : memref<16x128xf32, #tpu.memory_space<vmem>>, vector<16x128xf32>,
      %c0_19 = arith.constant 0 : index
      %c0_20 = arith.constant 0 : index
      %49 = vector.load %arg8[%c0_19, %c0_20] : memref<16x128xf32, #tpu.memory_space<vmem>>, vector<16x128xf32>
      tpu.vector_store %arg8[%c0_19, %c0_20], %38 {strides = array<i32>} : memref<16x128xf32, #tpu.memory_space<vmem>>, vector<16x128xf32>,
    } else {
    }
    %c1_i32_3 = arith.constant 1 : i32
    %16 = arith.cmpi slt, %1, %c1_i32_3 : i32
    %17 = arith.extui %16 : i1 to i32
    %c0_i32_4 = arith.constant 0 : i32
    %18 = arith.cmpi ne, %17, %c0_i32_4 : i32
    scf.if %18 {
      %c0 = arith.constant 0 : index
      %c0_7 = arith.constant 0 : index
      %22 = vector.load %arg2[%c0, %c0_7] : memref<16x128xf32, #tpu.memory_space<vmem>>, vector<16x128xf32>
      %cst = arith.constant 1.200000e+00 : f32
      %23 = vector.broadcast %cst : f32 to vector<16x128xf32>
      %24 = arith.subf %23, %22 : vector<16x128xf32>
      %cst_8 = arith.constant 0.000000e+00 : f32
      %25 = vector.broadcast %cst_8 : f32 to vector<16x128xf32>
      %26 = arith.maximumf %24, %25 : vector<16x128xf32>
      %cst_9 = arith.constant 8.000000e-01 : f32
      %27 = vector.broadcast %cst_9 : f32 to vector<16x128xf32>
      %28 = arith.subf %22, %27 : vector<16x128xf32>
      %29 = arith.mulf %26, %28 : vector<16x128xf32>
      %cst_10 = arith.constant 3.200000e+01 : f32
      %30 = vector.broadcast %cst_10 : f32 to vector<16x128xf32>
      %31 = arith.mulf %29, %30 : vector<16x128xf32>
      %c8_i32 = arith.constant 8 : i32
      %32 = vector.broadcast %c8_i32 : i32 to vector<16x128xi32>
      %33 = arith.cmpi slt, %12, %32 : vector<16x128xi32>
      %cst_11 = arith.constant 0xFF800000 : f32
      %34 = vector.broadcast %cst_11 : f32 to vector<16x128xf32>
      %35 = arith.select %33, %31, %34 : vector<16x128xi1>, vector<16x128xf32>
      %c0_12 = arith.constant 0 : index
      %c0_13 = arith.constant 0 : index
      %36 = vector.load %arg6[%c0_12, %c0_13] : memref<16x128xf32, #tpu.memory_space<vmem>>, vector<16x128xf32>
      %c0_14 = arith.constant 0 : index
      %c0_15 = arith.constant 0 : index
      %37 = vector.load %arg7[%c0_14, %c0_15] : memref<16x128xf32, #tpu.memory_space<vmem>>, vector<16x128xf32>
      %38 = arith.maximumf %36, %35 : vector<16x128xf32>
      %39 = arith.minimumf %36, %35 : vector<16x128xf32>
      %40 = arith.subf %39, %38 : vector<16x128xf32>
      %41 = math.exp %40 : vector<16x128xf32>
      %42 = arith.cmpf ogt, %35, %36 : vector<16x128xf32>
      %43 = arith.mulf %41, %37 : vector<16x128xf32>
      %cst_16 = arith.constant 1.000000e+00 : f32
      %44 = vector.broadcast %cst_16 : f32 to vector<16x128xf32>
      %45 = arith.addf %43, %44 : vector<16x128xf32>
      %46 = arith.addf %37, %41 : vector<16x128xf32>
      %47 = arith.select %42, %45, %46 : vector<16x128xi1>, vector<16x128xf32>
      %c0_17 = arith.constant 0 : index
      %c0_18 = arith.constant 0 : index
      %48 = vector.load %arg7[%c0_17, %c0_18] : memref<16x128xf32, #tpu.memory_space<vmem>>, vector<16x128xf32>
      tpu.vector_store %arg7[%c0_17, %c0_18], %47 {strides = array<i32>} : memref<16x128xf32, #tpu.memory_space<vmem>>, vector<16x128xf32>,
      %c0_19 = arith.constant 0 : index
      %c0_20 = arith.constant 0 : index
      %49 = vector.load %arg6[%c0_19, %c0_20] : memref<16x128xf32, #tpu.memory_space<vmem>>, vector<16x128xf32>
      tpu.vector_store %arg6[%c0_19, %c0_20], %38 {strides = array<i32>} : memref<16x128xf32, #tpu.memory_space<vmem>>, vector<16x128xf32>,
    } else {
    }
    %c0_i32_5 = arith.constant 0 : i32
    %19 = arith.cmpi eq, %arg1, %c0_i32_5 : i32
    %20 = arith.extui %19 : i1 to i32
    %c0_i32_6 = arith.constant 0 : i32
    %21 = arith.cmpi ne, %20, %c0_i32_6 : i32
    scf.if %21 {
      %c0 = arith.constant 0 : index
      %c0_7 = arith.constant 0 : index
      %22 = vector.load %arg6[%c0, %c0_7] : memref<16x128xf32, #tpu.memory_space<vmem>>, vector<16x128xf32>
      %c0_8 = arith.constant 0 : index
      %c0_9 = arith.constant 0 : index
      %23 = vector.load %arg7[%c0_8, %c0_9] : memref<16x128xf32, #tpu.memory_space<vmem>>, vector<16x128xf32>
      %cst = arith.constant dense<0xFF800000> : vector<16xf32>
      %24 = vector.multi_reduction <maximumf>, %22, %cst [1] : vector<16x128xf32> to vector<16xf32>
      %25 = vector.shape_cast %24 : vector<16xf32> to vector<16x1xf32>
      %cst_10 = arith.constant dense<0xFF800000> : vector<1xf32>
      %26 = vector.multi_reduction <maximumf>, %25, %cst_10 [0] : vector<16x1xf32> to vector<1xf32>
      %27 = vector.shape_cast %26 : vector<1xf32> to vector<1x1xf32>
      %28 = vector.broadcast %27 : vector<1x1xf32> to vector<16x128xf32>
      %29 = arith.subf %22, %28 : vector<16x128xf32>
      %30 = math.exp %29 : vector<16x128xf32>
      %31 = arith.mulf %23, %30 : vector<16x128xf32>
      %cst_11 = arith.constant dense<0.000000e+00> : vector<16xf32>
      %32 = vector.multi_reduction <add>, %31, %cst_11 [1] : vector<16x128xf32> to vector<16xf32>
      %33 = vector.shape_cast %32 : vector<16xf32> to vector<16x1xf32>
      %cst_12 = arith.constant dense<0.000000e+00> : vector<1xf32>
      %34 = vector.multi_reduction <add>, %33, %cst_12 [0] : vector<16x1xf32> to vector<1xf32>
      %35 = vector.shape_cast %34 : vector<1xf32> to vector<1x1xf32>
      %36 = math.log %35 : vector<1x1xf32>
      %37 = arith.addf %27, %36 : vector<1x1xf32>
      %c0_13 = arith.constant 0 : index
      %c0_14 = arith.constant 0 : index
      %38 = vector.load %arg4[%c0_13, %c0_14] : memref<1x1xf32, #tpu.memory_space<vmem>>, vector<1x1xf32>
      tpu.vector_store %arg4[%c0_13, %c0_14], %37 {strides = array<i32>} : memref<1x1xf32, #tpu.memory_space<vmem>>, vector<1x1xf32>,
      %c0_15 = arith.constant 0 : index
      %c0_16 = arith.constant 0 : index
      %39 = vector.load %arg8[%c0_15, %c0_16] : memref<16x128xf32, #tpu.memory_space<vmem>>, vector<16x128xf32>
      %c0_17 = arith.constant 0 : index
      %c0_18 = arith.constant 0 : index
      %40 = vector.load %arg9[%c0_17, %c0_18] : memref<16x128xf32, #tpu.memory_space<vmem>>, vector<16x128xf32>
      %cst_19 = arith.constant dense<0xFF800000> : vector<16xf32>
      %41 = vector.multi_reduction <maximumf>, %39, %cst_19 [1] : vector<16x128xf32> to vector<16xf32>
      %42 = vector.shape_cast %41 : vector<16xf32> to vector<16x1xf32>
      %cst_20 = arith.constant dense<0xFF800000> : vector<1xf32>
      %43 = vector.multi_reduction <maximumf>, %42, %cst_20 [0] : vector<16x1xf32> to vector<1xf32>
      %44 = vector.shape_cast %43 : vector<1xf32> to vector<1x1xf32>
      %45 = vector.broadcast %44 : vector<1x1xf32> to vector<16x128xf32>
      %46 = arith.subf %39, %45 : vector<16x128xf32>
      %47 = math.exp %46 : vector<16x128xf32>
      %48 = arith.mulf %40, %47 : vector<16x128xf32>
      %cst_21 = arith.constant dense<0.000000e+00> : vector<16xf32>
      %49 = vector.multi_reduction <add>, %48, %cst_21 [1] : vector<16x128xf32> to vector<16xf32>
      %50 = vector.shape_cast %49 : vector<16xf32> to vector<16x1xf32>
      %cst_22 = arith.constant dense<0.000000e+00> : vector<1xf32>
      %51 = vector.multi_reduction <add>, %50, %cst_22 [0] : vector<16x1xf32> to vector<1xf32>
      %52 = vector.shape_cast %51 : vector<1xf32> to vector<1x1xf32>
      %53 = math.log %52 : vector<1x1xf32>
      %54 = arith.addf %44, %53 : vector<1x1xf32>
      %c0_23 = arith.constant 0 : index
      %c0_24 = arith.constant 0 : index
      %55 = vector.load %arg5[%c0_23, %c0_24] : memref<1x1xf32, #tpu.memory_space<vmem>>, vector<1x1xf32>
      tpu.vector_store %arg5[%c0_23, %c0_24], %54 {strides = array<i32>} : memref<1x1xf32, #tpu.memory_space<vmem>>, vector<1x1xf32>,
    } else {
    }
    return
  }
  func.func @transform_0(%arg0: i32, %arg1: i32) -> (i32, i32) {
    %c1_i32 = arith.constant 1 : i32
    %0 = arith.muli %arg0, %c1_i32 : i32
    %1 = arith.addi %0, %arg1 : i32
    %c0_i32 = arith.constant 0 : i32
    %2 = arith.minsi %1, %c0_i32 : i32
    %c0_i32_0 = arith.constant 0 : i32
    %c0_i32_1 = arith.constant 0 : i32
    return %2, %c0_i32_0 : i32, i32
  }
  func.func @transform_1(%arg0: i32, %arg1: i32) -> (i32, i32) {
    %c1_i32 = arith.constant 1 : i32
    %0 = arith.muli %arg0, %c1_i32 : i32
    %1 = arith.addi %0, %arg1 : i32
    %c0_i32 = arith.constant 0 : i32
    %2 = arith.minsi %1, %c0_i32 : i32
    %c0_i32_0 = arith.constant 0 : i32
    %c0_i32_1 = arith.constant 0 : i32
    return %2, %c0_i32_0 : i32, i32
  }
  func.func @transform_2(%arg0: i32, %arg1: i32) -> (i32, i32) {
    %c0_i32 = arith.constant 0 : i32
    %c0_i32_0 = arith.constant 0 : i32
    return %arg0, %c0_i32 : i32, i32
  }
  func.func @transform_3(%arg0: i32, %arg1: i32) -> (i32, i32) {
    %c0_i32 = arith.constant 0 : i32
    %c0_i32_0 = arith.constant 0 : i32
    return %arg0, %c0_i32 : i32, i32
  }
}

</mosaic_0001>

<llo_original>
// kernel: tpu_custom_call.1
$region0: #{tpu_custom_call.1}
  #allocation0 [shape = 'u32[]', space=smem, size = 0x4, offset = 0x4, fixed_abs, tag = 'smem constant byte address 0x4 - core index']
  #allocation1 [shape = 'u32[144,128]{1,0:T(1,128)}', space=vmem, size = 0x12000, scoped, tag = 'internal scratch']
  #allocation2 [shape = 'f32[16,128]{1,0:T(8,128)}', space=vmem, size = 0x2000, scoped, tag = 'scratch operand']
  #allocation3 [shape = 'f32[16,128]{1,0:T(8,128)}', space=vmem, size = 0x2000, scoped, tag = 'scratch operand']
  #allocation4 [shape = 'f32[16,128]{1,0:T(8,128)}', space=vmem, size = 0x2000, scoped, tag = 'scratch operand']
  #allocation5 [shape = 'f32[16,128]{1,0:T(8,128)}', space=vmem, size = 0x2000, scoped, tag = 'scratch operand']
  %s0 = inlined_call_operand.hbm [shape: f32[16,128], index: 0, kind: input, shape index: {}]
  %s1 = inlined_call_operand.hbm [shape: f32[16,128], index: 1, kind: input, shape index: {}]
  %s2 = inlined_call_operand.hbm [shape: f32[1,1], index: 2, kind: output, shape index: {0}]
  %s3 = inlined_call_operand.hbm [shape: f32[1,1], index: 3, kind: output, shape index: {1}]
  %4 = xla_tuple %s2, %s3
  %s5 = sld [smem:[#allocation0]]
  $region46: #{tpu_custom_call.1} parent=0
    _
  %s7 = ssub.s32 1, %s5
  %s8 = scalar_select 0, %s7, %s5
  $region1: #{tpu_custom_call.1} parent=0
    #allocation6 [shape = 'u8[8192]{0}', space=vmem, size = 0x2000, scoped, tag = 'input window, operand 0, single buffered']
    #allocation7 [shape = 's32[1]{0}', space=sflag, size = 0x4, scoped, tag = 'scoped memory for tpu_custom_call.1']
    #allocation8 [shape = 's32[1]{0}', space=sflag, size = 0x4, scoped, tag = 'scoped memory for tpu_custom_call.1']
    #allocation9 [shape = 'u8[8192]{0}', space=vmem, size = 0x2000, scoped, tag = 'input window, operand 1, single buffered']
    #allocation10 [shape = 's32[1]{0}', space=sflag, size = 0x4, scoped, tag = 'scoped memory for tpu_custom_call.1']
    #allocation11 [shape = 'u8[512]{0}', space=vmem, size = 0x400, scoped, tag = 'output window, operand 0, single buffered']
    #allocation12 [shape = 'u8[512]{0}', space=vmem, size = 0x400, scoped, tag = 'output window, operand 1, single buffered']
    #allocation13 [shape = 's32[1]{0}', space=sflag, size = 0x4, scoped, tag = 'scoped memory for tpu_custom_call.1']
    %9 = vsyncpa [#allocation7], 0
    %10 = vsyncpa [#allocation10], 0
    %11 = vsyncpa [#allocation8], 0
    %12 = vsyncpa [#allocation13], 0
    // Predicated region
    $region2: #{tpu_custom_call.1} parent=1 // pred_check
      _
    $region3: #{tpu_custom_call.1} parent=1 // pred_check_branch
      %14 = sbr.rel (0) target = $region5
    $region4: #{tpu_custom_call.1} parent=1 // pred_region
      %s15 = sadd.s32 0, 0
      %p16 = scmp.lt.s32.totalorder %s15, 0
      %s17 = scalar_select %p16, %s15, 0
      %s18 = smul.u32 2, %s17
      %s20 = ssub.s32 256, 256
      %21 = vsyncadd [#allocation7], %s20
      %s22 = smul.addr %s18, 128
      %s23 = scalar_lea.hbm %s0, %s22
      %s24 = sshll.u32 [#allocation6], 4
      %s25 = int_to_ptr.vmem [resolvable:$true] %s24
      %30 = dma.hbm_to_vmem [thread:$0]  %s23, 256, %s25, [#allocation7], 128, 128, 8
    $region5: #{tpu_custom_call.1} parent=1 // pred_fallthru
      _
    // Predicated region
    $region6: #{tpu_custom_call.1} parent=1 // pred_check
      _
    $region7: #{tpu_custom_call.1} parent=1 // pred_check_branch
      %32 = sbr.rel (0) target = $region9
    $region8: #{tpu_custom_call.1} parent=1 // pred_region
      %s33 = sadd.s32 0, 0
      %p34 = scmp.lt.s32.totalorder %s33, 0
      %s35 = scalar_select %p34, %s33, 0
      %s36 = smul.u32 2, %s35
      %s38 = ssub.s32 256, 256
      %39 = vsyncadd [#allocation10], %s38
      %s40 = smul.addr %s36, 128
      %s41 = scalar_lea.hbm %s1, %s40
      %s42 = sshll.u32 [#allocation9], 4
      %s43 = int_to_ptr.vmem [resolvable:$true] %s42
      %48 = dma.hbm_to_vmem [thread:$0]  %s41, 256, %s43, [#allocation10], 128, 128, 8
    $region9: #{tpu_custom_call.1} parent=1 // pred_fallthru
      _
    // Predicated region
    $region10: #{tpu_custom_call.1} parent=1 // pred_check
      _
    $region11: #{tpu_custom_call.1} parent=1 // pred_check_branch
      %50 = sbr.rel (0) target = $region13
    $region12: #{tpu_custom_call.1} parent=1 // pred_region
      %51 = dma.done [#allocation7], 256
    $region13: #{tpu_custom_call.1} parent=1 // pred_fallthru
      _
    // Predicated region
    $region14: #{tpu_custom_call.1} parent=1 // pred_check
      _
    $region15: #{tpu_custom_call.1} parent=1 // pred_check_branch
      %53 = sbr.rel (0) target = $region17
    $region16: #{tpu_custom_call.1} parent=1 // pred_region
      %54 = dma.done [#allocation10], 256
    $region17: #{tpu_custom_call.1} parent=1 // pred_fallthru
      _
    %s55 = sadd.s32 0, 0
    %p56 = scmp.lt.s32.totalorder %s55, 0
    %s57 = scalar_select %p56, %s55, 0
    %s58 = smul.u32 2, %s57
    %s59 = sadd.s32 0, 0
    %p60 = scmp.lt.s32.totalorder %s59, 0
    %s61 = scalar_select %p60, %s59, 0
    %s62 = smul.u32 2, %s61
    %s63 = sadd.s32 0, 0
    %p64 = scmp.eq.s32.totalorder 0, 0
    // Predicated region
    $region18: #{tpu_custom_call.1} parent=1 // pred_check
      %p65 = pneg %p64
    $region19: #{tpu_custom_call.1} parent=1 // pred_check_branch
      %67 = sbr.rel (%p65) target = $region21
    $region20: #{tpu_custom_call.1} parent=1 // pred_region
      %68 = vst [vmem:[#allocation2] sm:$0xff] -1e+30
      %69 = vst [vmem:[#allocation2 + $0x8] sm:$0xff] -1e+30
      %70 = vst [vmem:[#allocation4] sm:$0xff] -1e+30
      %71 = vst [vmem:[#allocation4 + $0x8] sm:$0xff] -1e+30
      %72 = vst [vmem:[#allocation3] sm:$0xff] 0.0
      %73 = vst [vmem:[#allocation3 + $0x8] sm:$0xff] 0.0
      %74 = vst [vmem:[#allocation5] sm:$0xff] 0.0
      %75 = vst [vmem:[#allocation5 + $0x8] sm:$0xff] 0.0
    $region21: #{tpu_custom_call.1} parent=1 // pred_fallthru
      _
    %v76 = vlaneseq
    %v77 = vshrl.u32 %v76, 7
    %v78 = vadd.s32 %v77, 8
    %v79 = vlaneseq
    %v80 = vand.u32 %v79, 127
    %s81 = smul.u32 %s63, 2048
    %v82 = vmul.u32 %v77, 128
    %v83 = vmul.u32 %v78, 128
    %v84 = vstv %s81
    %v85 = vadd.s32 %v84, %v82
    %v86 = vadd.s32 %v84, %v83
    %v87 = vadd.s32 %v85, %v80
    %v88 = vadd.s32 %v86, %v80
    %p89 = scmp.lt.s32.totalorder %s63, 1
    // Predicated region
    $region22: #{tpu_custom_call.1} parent=1 // pred_check
      %p90 = pneg %p89
    $region23: #{tpu_custom_call.1} parent=1 // pred_check_branch
      %92 = sbr.rel (%p90) target = $region25
    $region24: #{tpu_custom_call.1} parent=1 // pred_region
      %v93 = vld [vmem:[#allocation9] sm:$0xff]
      %v94 = vld [vmem:[#allocation9 + $0x8] sm:$0xff]
      %v95 = vadd.f32 %v93, 0.2
      %v96 = vadd.f32 %v94, 0.2
      %v97 = vmax.f32 %v95, 0.0
      %v98 = vmax.f32 %v96, 0.0
      %v99 = vsub.f32 0.2, %v93
      %v100 = vsub.f32 0.2, %v94
      %v101 = vmul.f32 %v97, %v99
      %v102 = vmul.f32 %v98, %v100
      %v103 = vmul.f32 %v101, 16.0
      %v104 = vmul.f32 %v102, 16.0
      %vm105 = vcmp.lt.s32.totalorder %v87, 16
      %vm106 = vcmp.lt.s32.totalorder %v88, 16
      %v107 = vsel %vm105, %v103, -inf
      %v108 = vsel %vm106, %v104, -inf
      %v109 = vld [vmem:[#allocation4] sm:$0xff]
      %v110 = vld [vmem:[#allocation4 + $0x8] sm:$0xff]
      %v111 = vld [vmem:[#allocation5] sm:$0xff]
      %v112 = vld [vmem:[#allocation5 + $0x8] sm:$0xff]
      %v113 = vmax.f32 %v109, %v107
      %v114 = vmax.f32 %v110, %v108
      %v115 = vmin.f32 %v109, %v107
      %v116 = vmin.f32 %v110, %v108
      %v117 = vsub.f32 %v115, %v113
      %v118 = vsub.f32 %v116, %v114
      %v119 = vmul.f32 %v117, 1.442695
      %v120 = vpow.pop %v119
      %v121 = vmul.f32 %v118, 1.442695
      %v122 = vpow.pop %v121
      %vm123 = vcmp.gt.f32.partialorder %v107, %v109
      %vm124 = vcmp.gt.f32.partialorder %v108, %v110
      %v125 = vmul.f32 %v120, %v111
      %v126 = vmul.f32 %v122, %v112
      %v127 = vadd.f32 %v125, 1.0
      %v128 = vadd.f32 %v126, 1.0
      %v129 = vadd.f32 %v111, %v120
      %v130 = vadd.f32 %v112, %v122
      %v131 = vsel %vm123, %v127, %v129
      %v132 = vsel %vm124, %v128, %v130
      %133 = vst [vmem:[#allocation5] sm:$0xff] %v131
      %134 = vst [vmem:[#allocation5 + $0x8] sm:$0xff] %v132
      %135 = vst [vmem:[#allocation4] sm:$0xff] %v113
      %136 = vst [vmem:[#allocation4 + $0x8] sm:$0xff] %v114
      %v137 = vld [vmem:[#allocation6] sm:$0xff]
      %v138 = vld [vmem:[#allocation6 + $0x8] sm:$0xff]
      %v139 = vsub.f32 1.2, %v137
      %v140 = vsub.f32 1.2, %v138
      %v141 = vmax.f32 %v139, 0.0
      %v142 = vmax.f32 %v140, 0.0
      %v143 = vsub.f32 %v137, 0.8
      %v144 = vsub.f32 %v138, 0.8
      %v145 = vmul.f32 %v141, %v143
      %v146 = vmul.f32 %v142, %v144
      %v147 = vmul.f32 %v145, 32.0
      %v148 = vmul.f32 %v146, 32.0
      %vm149 = vcmp.lt.s32.totalorder %v87, 8
      %vm150 = vcmp.lt.s32.totalorder %v88, 8
      %v151 = vsel %vm149, %v147, -inf
      %v152 = vsel %vm150, %v148, -inf
      %v153 = vld [vmem:[#allocation2] sm:$0xff]
      %v154 = vld [vmem:[#allocation2 + $0x8] sm:$0xff]
      %v155 = vld [vmem:[#allocation3] sm:$0xff]
      %v156 = vld [vmem:[#allocation3 + $0x8] sm:$0xff]
      %v157 = vmax.f32 %v153, %v151
      %v158 = vmax.f32 %v154, %v152
      %v159 = vmin.f32 %v153, %v151
      %v160 = vmin.f32 %v154, %v152
      %v161 = vsub.f32 %v159, %v157
      %v162 = vsub.f32 %v160, %v158
      %v163 = vmul.f32 %v161, 1.442695
      %v164 = vpow.pop %v163
      %v165 = vmul.f32 %v162, 1.442695
      %v166 = vpow.pop %v165
      %vm167 = vcmp.gt.f32.partialorder %v151, %v153
      %vm168 = vcmp.gt.f32.partialorder %v152, %v154
      %v169 = vmul.f32 %v164, %v155
      %v170 = vmul.f32 %v166, %v156
      %v171 = vadd.f32 %v169, 1.0
      %v172 = vadd.f32 %v170, 1.0
      %v173 = vadd.f32 %v155, %v164
      %v174 = vadd.f32 %v156, %v166
      %v175 = vsel %vm167, %v171, %v173
      %v176 = vsel %vm168, %v172, %v174
      %177 = vst [vmem:[#allocation3] sm:$0xff] %v175
      %178 = vst [vmem:[#allocation3 + $0x8] sm:$0xff] %v176
      %179 = vst [vmem:[#allocation2] sm:$0xff] %v157
      %180 = vst [vmem:[#allocation2 + $0x8] sm:$0xff] %v158
    $region25: #{tpu_custom_call.1} parent=1 // pred_fallthru
      _
    // Predicated region
    $region26: #{tpu_custom_call.1} parent=1 // pred_check
      %p181 = pneg %p64
    $region27: #{tpu_custom_call.1} parent=1 // pred_check_branch
      %183 = sbr.rel (%p181) target = $region29
    $region28: #{tpu_custom_call.1} parent=1 // pred_region
      %v184 = vld [vmem:[#allocation2] sm:$0xff]
      %v185 = vld [vmem:[#allocation2 + $0x8] sm:$0xff]
      %v186 = vld [vmem:[#allocation3] sm:$0xff]
      %v187 = vld [vmem:[#allocation3 + $0x8] sm:$0xff]
      %188 = vmax.xlane.f32.xlu0 %v184
      %v189 = vpop.xlane.xlu0 %188
      %190 = vmax.xlane.f32.xlu0 %v185
      %v191 = vpop.xlane.xlu0 %190
      %v192 = vmax.f32 %v189, %v191
      %v193 = vrot.slane %v192, 4
      %v194 = vmax.f32 %v192, %v193
      %v195 = vrot.slane %v194, 2
      %v196 = vmax.f32 %v194, %v195
      %v197 = vrot.slane %v196, 1
      %v198 = vmax.f32 %v196, %v197
      %v199 = vsub.f32 %v184, %v198
      %v200 = vsub.f32 %v185, %v198
      %v201 = vmul.f32 %v199, 1.442695
      %v202 = vpow.pop %v201
      %v203 = vmul.f32 %v200, 1.442695
      %v204 = vpow.pop %v203
      %v205 = vmul.f32 %v186, %v202
      %v206 = vmul.f32 %v187, %v204
      %207 = vadd.xlane.f32.xlu0 %v205
      %v208 = vpop.xlane.xlu0 %207
      %209 = vadd.xlane.f32.xlu0 %v206
      %v210 = vpop.xlane.xlu0 %209
      %v211 = vadd.f32 %v208, %v210
      %v212 = vrot.slane %v211, 4
      %v213 = vadd.f32 %v211, %v212
      %v214 = vrot.slane %v213, 2
      %v215 = vadd.f32 %v213, %v214
      %v216 = vrot.slane %v215, 1
      %v217 = vadd.f32 %v215, %v216
      %v218 = vlog2.pop %v217
      %v219 = vmul.f32 %v218, 0.6931472
      %v220 = vadd.f32 %v198, %v219
      %vm221 = vcmask 0
      %222 = vst.msk [vmem:[#allocation11] sm:$0x1] %vm221, %v220
      %v223 = vld [vmem:[#allocation4] sm:$0xff]
      %v224 = vld [vmem:[#allocation4 + $0x8] sm:$0xff]
      %v225 = vld [vmem:[#allocation5] sm:$0xff]
      %v226 = vld [vmem:[#allocation5 + $0x8] sm:$0xff]
      %227 = vmax.xlane.f32.xlu0 %v223
      %v228 = vpop.xlane.xlu0 %227
      %229 = vmax.xlane.f32.xlu0 %v224
      %v230 = vpop.xlane.xlu0 %229
      %v231 = vmax.f32 %v228, %v230
      %v232 = vrot.slane %v231, 4
      %v233 = vmax.f32 %v231, %v232
      %v234 = vrot.slane %v233, 2
      %v235 = vmax.f32 %v233, %v234
      %v236 = vrot.slane %v235, 1
      %v237 = vmax.f32 %v235, %v236
      %v238 = vsub.f32 %v223, %v237
      %v239 = vsub.f32 %v224, %v237
      %v240 = vmul.f32 %v238, 1.442695
      %v241 = vpow.pop %v240
      %v242 = vmul.f32 %v239, 1.442695
      %v243 = vpow.pop %v242
      %v244 = vmul.f32 %v225, %v241
      %v245 = vmul.f32 %v226, %v243
      %246 = vadd.xlane.f32.xlu0 %v244
      %v247 = vpop.xlane.xlu0 %246
      %248 = vadd.xlane.f32.xlu0 %v245
      %v249 = vpop.xlane.xlu0 %248
      %v250 = vadd.f32 %v247, %v249
      %v251 = vrot.slane %v250, 4
      %v252 = vadd.f32 %v250, %v251
      %v253 = vrot.slane %v252, 2
      %v254 = vadd.f32 %v252, %v253
      %v255 = vrot.slane %v254, 1
      %v256 = vadd.f32 %v254, %v255
      %v257 = vlog2.pop %v256
      %v258 = vmul.f32 %v257, 0.6931472
      %v259 = vadd.f32 %v237, %v258
      %260 = vst.msk [vmem:[#allocation12] sm:$0x1] %vm221, %v259
    $region29: #{tpu_custom_call.1} parent=1 // pred_fallthru
      _
    // Predicated region
    $region30: #{tpu_custom_call.1} parent=1 // pred_check
      _
    $region31: #{tpu_custom_call.1} parent=1 // pred_check_branch
      %262 = sbr.rel (0) target = $region33
    $region32: #{tpu_custom_call.1} parent=1 // pred_region
      %s264 = ssub.s32 16, 16
      %265 = vsyncadd [#allocation8], %s264
      %s267 = sshll.u32 [#allocation11], 4
      %s268 = int_to_ptr.vmem [resolvable:$true] %s267
      %270 = dma.vmem_to_hbm [thread:$0]  %s268, 16, %s2, [#allocation8]
    $region33: #{tpu_custom_call.1} parent=1 // pred_fallthru
      _
    // Predicated region
    $region34: #{tpu_custom_call.1} parent=1 // pred_check
      _
    $region35: #{tpu_custom_call.1} parent=1 // pred_check_branch
      %272 = sbr.rel (0) target = $region37
    $region36: #{tpu_custom_call.1} parent=1 // pred_region
      %s274 = ssub.s32 16, 16
      %275 = vsyncadd [#allocation13], %s274
      %s277 = sshll.u32 [#allocation12], 4
      %s278 = int_to_ptr.vmem [resolvable:$true] %s277
      %280 = dma.vmem_to_hbm [thread:$0]  %s278, 16, %s3, [#allocation13]
    $region37: #{tpu_custom_call.1} parent=1 // pred_fallthru
      _
    // Predicated region
    $region38: #{tpu_custom_call.1} parent=1 // pred_check
      _
    $region39: #{tpu_custom_call.1} parent=1 // pred_check_branch
      %282 = sbr.rel (0) target = $region41
    $region40: #{tpu_custom_call.1} parent=1 // pred_region
      %283 = dma.done [#allocation8], 16
    $region41: #{tpu_custom_call.1} parent=1 // pred_fallthru
      _
    // Predicated region
    $region42: #{tpu_custom_call.1} parent=1 // pred_check
      _
    $region43: #{tpu_custom_call.1} parent=1 // pred_check_branch
      %285 = sbr.rel (0) target = $region45
    $region44: #{tpu_custom_call.1} parent=1 // pred_region
      %286 = dma.done [#allocation13], 16
    $region45: #{tpu_custom_call.1} parent=1 // pred_fallthru
      _
    %287 = vsyncpa [#allocation7], 1
    %288 = vsyncpa [#allocation10], 1
    %289 = vsyncpa [#allocation8], 1
    %290 = vsyncpa [#allocation13], 1

</llo_original>
